<compile_context>
chip_gen: v7x
topology: tpu7x:2x2x1
jax: 0.10.0
libtpu: 0.0.40
codegen_flags: <defaults>
</compile_context>

<pallas_src>
import functools
import math

import jax
import jax.numpy as jnp
from jax import lax
from jax.experimental import pallas as pl
from jax.experimental.pallas import tpu as pltpu

_LANE = 128
_SUBLANE = 8
_VPU_INPUT_MAX_DIM = 8          # below this K, do the input layer on the VPU, not the MXU
_MAX_BATCH_TILE = 1024          # rows per grid step for large batches (was 256)
_MIN_SPLIT_ROWS = 256           # below 2*this, keep one tile (grid-step overhead dominates)
_UNROLL_MAX_LAYERS = 4          # static-unroll hidden layers up to this depth, else fori_loop
_RESIDENT_WHID_MAX_BYTES = 4 << 20   # double-buffered hidden stack above this -> stream


def _round_up(x, m):
    return ((x + m - 1) // m) * m


def _pad_to(a, shape):
    pads = [(0, s - d) for d, s in zip(a.shape, shape)]
    if all(p == (0, 0) for p in pads):
        return a
    return jnp.pad(a, pads)


def _batch_tiling(batch, prefer_single_tile=False):
    """Return (tile_b, padded_batch); tile_b is a multiple of 8 dividing padded_batch."""
    b8 = _round_up(batch, _SUBLANE)
    if prefer_single_tile and b8 <= _MAX_BATCH_TILE:
        return b8, b8            # Softmax(0) couples batch rows: keep one tile if possible
    if b8 <= 2 * _MIN_SPLIT_ROWS:
        return b8, b8            # small batch: extra grid steps are pure overhead
    # >= 2 tiles so both of v7x's TensorCores get work; tile capped at _MAX_BATCH_TILE rows.
    tile_b = min(_MAX_BATCH_TILE, _round_up(-(-b8 // 2), _SUBLANE))
    return tile_b, _round_up(b8, tile_b)


def _vmem_limit(residency_bytes):
    return int(min(64 << 20, max(8 << 20, int(1.5 * residency_bytes) + (2 << 20))))


# --------------------------------------------------------------------------------------
# In-kernel building blocks
# --------------------------------------------------------------------------------------
def _input_layer(x, w_in_ref, b_in_ref, use_vpu_input):
    if use_vpu_input:
        # K is tiny (e.g. 2): a K=2 MXU matmul wastes the systolic array; compute it as
        # rank-1 broadcast multiply-adds on the VPU (exact f32) instead.
        s = x[:, 0:1] * w_in_ref[0:1, :]
        for d in range(1, x.shape[1]):
            s = s + x[:, d:d + 1] * w_in_ref[d:d + 1, :]
    else:
        s = jnp.dot(x, w_in_ref[...], preferred_element_type=jnp.float32)
    return jnp.tanh(s + b_in_ref[...])


def _finalize(out, o_ref, add_sftmax, true_batch):
    if add_sftmax:
        # nn.Softmax(0): normalize over the batch axis.  Only used when the whole
        # (padded) batch lives in this single tile; mask the zero-padded rows.
        rows = lax.broadcasted_iota(jnp.int32, out.shape, 0)
        valid = rows < true_batch
        logits = jnp.where(valid, out, jnp.float32(-1e30))
        logits = logits - jnp.max(logits, axis=0, keepdims=True)
        e = jnp.where(valid, jnp.exp(logits), jnp.float32(0.0))
        denom = jnp.sum(e, axis=0, keepdims=True)
        out = e / denom                         # exact division: columns sum to 1 (f32)
    o_ref[...] = out.astype(o_ref.dtype)


# --------------------------------------------------------------------------------------
# Kernels
# --------------------------------------------------------------------------------------
def _mlp_kernel_resident(*refs, n_hidden_minus_1, use_vpu_input, add_sftmax, true_batch):
    """MLP forward with all weights VMEM-resident (small/medium nets)."""
    if n_hidden_minus_1 > 0:
        (x_ref, w_in_ref, b_in_ref, w_hid_ref, b_hid_ref,
         w_out_ref, b_out_ref, o_ref) = refs
    else:
        x_ref, w_in_ref, b_in_ref, w_out_ref, b_out_ref, o_ref = refs
        w_hid_ref = b_hid_ref = None

    h = _input_layer(x_ref[...], w_in_ref, b_in_ref, use_vpu_input)
    mm_dtype = w_out_ref.dtype                  # f32 or bf16 (MXU accumulates in f32)

    if n_hidden_minus_1 > 0:
        if n_hidden_minus_1 <= _UNROLL_MAX_LAYERS:
            for k in range(n_hidden_minus_1):   # static unroll for shallow nets
                h = jnp.tanh(
                    jnp.dot(h.astype(mm_dtype), w_hid_ref[k],
                            preferred_element_type=jnp.float32) + b_hid_ref[k])
        else:
            # fori_loop bounds vreg live ranges for deep nets (dynamic layer index).
            def body(k, hc):
                return jnp.tanh(
                    jnp.dot(hc.astype(mm_dtype), w_hid_ref[k],
                            preferred_element_type=jnp.float32) + b_hid_ref[k])
            h = lax.fori_loop(0, n_hidden_minus_1, body, h)

    out = (jnp.dot(h.astype(mm_dtype), w_out_ref[...],
                   preferred_element_type=jnp.float32) + b_out_ref[...])
    _finalize(out, o_ref, add_sftmax, true_batch)


def _mlp_kernel_streamed(x_ref, w_in_ref, b_in_ref, b_hid_ref, w_out_ref, b_out_ref,
                         w_hid_hbm, o_ref, h_ref, wbuf, sem,
                         *, n_hidden_minus_1, use_vpu_input, add_sftmax, true_batch):
    """MLP forward with the hidden-weight stack left in HBM and streamed per layer
    through a 2-slot VMEM scratch (manual double-buffered DMA)."""
    n_layers = n_hidden_minus_1                 # >= 1 on this path

    # Prime layer 0 weights into slot 0; the DMA overlaps the input layer below.
    pltpu.make_async_copy(w_hid_hbm.at[0], wbuf.at[0], sem.at[0]).start()

    h_ref[...] = _input_layer(x_ref[...], w_in_ref, b_in_ref, use_vpu_input)
    mm_dtype = w_out_ref.dtype

    @pl.loop(0, n_layers)
    def _(k):
        slot = k & 1
        pltpu.make_async_copy(w_hid_hbm.at[0], wbuf.at[slot], sem.at[slot]).wait()

        @pl.when(k + 1 < n_layers)
        def _():
            pltpu.make_async_copy(w_hid_hbm.at[k + 1], wbuf.at[1 - slot],
                                  sem.at[1 - slot]).start()

        h_ref[...] = jnp.tanh(
            jnp.dot(h_ref[...].astype(mm_dtype), wbuf[slot],
                    preferred_element_type=jnp.float32) + b_hid_ref[k])

    out = (jnp.dot(h_ref[...].astype(mm_dtype), w_out_ref[...],
                   preferred_element_type=jnp.float32) + b_out_ref[...])
    _finalize(out, o_ref, add_sftmax, true_batch)


def _linreg_kernel(x_ref, w_ref, b_ref, o_ref, *, use_vpu_input):
    """n_hidden_layers == 0 path: a single linear layer."""
    x = x_ref[...]
    if use_vpu_input:
        s = x[:, 0:1] * w_ref[0:1, :]
        for d in range(1, x.shape[1]):
            s = s + x[:, d:d + 1] * w_ref[d:d + 1, :]
    else:
        s = jnp.dot(x, w_ref[...], preferred_element_type=jnp.float32)
    o_ref[...] = (s + b_ref[...]).astype(o_ref.dtype)


# --------------------------------------------------------------------------------------
# Wrappers
# --------------------------------------------------------------------------------------
def _linear_regression_forward(x, params):
    w, b = params["w_lin"], params["b_lin"]
    batch, input_dim = x.shape
    out_dim = w.shape[1]
    o_pad = _round_up(out_dim, _LANE)
    tile_b, b_pad = _batch_tiling(batch)
    num_tiles = b_pad // tile_b

    x_p = _pad_to(x, (b_pad, input_dim))
    w_p = _pad_to(jnp.asarray(w, jnp.float32), (input_dim, o_pad))
    b_p = _pad_to(jnp.asarray(b, jnp.float32), (1, o_pad))

    kernel = functools.partial(
        _linreg_kernel, use_vpu_input=input_dim <= _VPU_INPUT_MAX_DIM)

    # Residency: double-buffered x/out tiles + double-buffered (constant) weights.
    resid = (2 * (tile_b * input_dim + tile_b * o_pad) * 4
             + 2 * (int(w_p.size) + int(b_p.size)) * 4)
    out_padded = pl.pallas_call(
        kernel,
        out_shape=jax.ShapeDtypeStruct((b_pad, o_pad), jnp.float32),
        grid=(num_tiles,),
        in_specs=[
            pl.BlockSpec((tile_b, input_dim), lambda i: (i, 0)),
            pl.BlockSpec((input_dim, o_pad), lambda i: (0, 0)),
            pl.BlockSpec((1, o_pad), lambda i: (0, 0)),
        ],
        out_specs=pl.BlockSpec((tile_b, o_pad), lambda i: (i, 0)),
        compiler_params=pltpu.CompilerParams(
            dimension_semantics=("parallel",),
            vmem_limit_bytes=_vmem_limit(resid),
        ),
        cost_estimate=pl.CostEstimate(
            flops=2 * b_pad * input_dim * o_pad,
            transcendentals=0,
            bytes_accessed=4 * (int(x_p.size) + num_tiles * (int(w_p.size) + int(b_p.size))
                                + b_pad * o_pad),
        ),
    )(x_p, w_p, b_p)
    return out_padded[:batch, :out_dim]


def neural_net_forward(x, params, *, add_sftmax_layer=False, weights_dtype=jnp.float32):
    """Fused MLP forward.  x: [batch, input_dim] float32; params from init_params().

    weights_dtype=jnp.bfloat16 casts hidden/output weights to bf16 (MXU-native on
    v5e/v6e/v7x, half the weight residency/DMA); accumulation stays f32, the tiny-K
    input layer and the softmax stay f32.  Default f32 is numerically exact.
    """
    x = jnp.asarray(x, jnp.float32)
    batch, input_dim = x.shape

    if "w_lin" in params:                      # n_hidden_layers == 0 path
        return _linear_regression_forward(x, params)

    w_in, b_in = params["w_in"], params["b_in"]
    w_hid, b_hid = params["w_hid"], params["b_hid"]
    w_out, b_out = params["w_out"], params["b_out"]

    neurons = w_in.shape[1]
    out_dim = w_out.shape[1]
    n_hidden_minus_1 = w_hid.shape[0]

    n_pad = _round_up(neurons, _LANE)
    o_pad = _round_up(out_dim, _LANE)
    tile_b, b_pad = _batch_tiling(batch, prefer_single_tile=add_sftmax_layer)
    num_tiles = b_pad // tile_b

    w_dtype = jnp.dtype(weights_dtype)
    itemsize = w_dtype.itemsize
    f32 = 4

    # Zero-pad feature dims to lane-dense multiples of 128 (exact, see header).
    x_p = _pad_to(x, (b_pad, input_dim))
    w_in_p = _pad_to(jnp.asarray(w_in, jnp.float32), (input_dim, n_pad))
    b_in_p = _pad_to(jnp.asarray(b_in, jnp.float32), (1, n_pad))
    w_out_p = _pad_to(jnp.asarray(w_out, w_dtype), (n_pad, o_pad))
    b_out_p = _pad_to(jnp.asarray(b_out, jnp.float32), (1, o_pad))

    use_vpu_input = input_dim <= _VPU_INPUT_MAX_DIM
    sftmax_in_kernel = add_sftmax_layer and num_tiles == 1

    whid_bytes = n_hidden_minus_1 * n_pad * n_pad * itemsize
    # Pallas double-buffers every BlockSpec input (even with a constant index map);
    # above the threshold, stream the hidden stack per layer via manual DMA instead.
    stream_whid = (n_hidden_minus_1 > 0) and (2 * whid_bytes > _RESIDENT_WHID_MAX_BYTES)

    common_kwargs = dict(
        n_hidden_minus_1=n_hidden_minus_1,
        use_vpu_input=use_vpu_input,
        add_sftmax=sftmax_in_kernel,
        true_batch=batch,
    )

    x_spec = pl.BlockSpec((tile_b, input_dim), lambda i: (i, 0))
    w_in_spec = pl.BlockSpec((input_dim, n_pad), lambda i: (0, 0))
    b_in_spec = pl.BlockSpec((1, n_pad), lambda i: (0, 0))
    w_out_spec = pl.BlockSpec((n_pad, o_pad), lambda i: (0, 0))
    b_out_spec = pl.BlockSpec((1, o_pad), lambda i: (0, 0))
    out_specs = pl.BlockSpec((tile_b, o_pad), lambda i: (i, 0))

    if n_hidden_minus_1 > 0:
        b_hid_p = _pad_to(jnp.asarray(b_hid, jnp.float32),
                          (n_hidden_minus_1, 1, n_pad))
        b_hid_spec = pl.BlockSpec((n_hidden_minus_1, 1, n_pad), lambda i: (0, 0, 0))
        w_hid_p = _pad_to(jnp.asarray(w_hid, w_dtype),
                          (n_hidden_minus_1, n_pad, n_pad))

    # ---- per-grid-step VMEM residency estimate (drives vmem_limit_bytes) ----
    weights_resident = ((int(w_in_p.size) + int(b_in_p.size) + int(b_out_p.size)) * f32
                        + int(w_out_p.size) * itemsize)
    if n_hidden_minus_1 > 0:
        weights_resident += int(b_hid_p.size) * f32
        if not stream_whid:
            weights_resident += int(w_hid_p.size) * itemsize
    tiles_db = 2 * (tile_b * input_dim + tile_b * o_pad) * f32   # double-buffered x/out
    acts = 3 * tile_b * n_pad * f32 + tile_b * o_pad * f32       # value working set
    scratch_bytes = (2 * n_pad * n_pad * itemsize + tile_b * n_pad * f32) if stream_whid else 0
    resid = 2 * weights_resident + tiles_db + acts + scratch_bytes

    # ---- build call ----
    if stream_whid:
        kernel = functools.partial(_mlp_kernel_streamed, **common_kwargs)
        args = [x_p, w_in_p, b_in_p, b_hid_p, w_out_p, b_out_p, w_hid_p]
        in_specs = [x_spec, w_in_spec, b_in_spec, b_hid_spec, w_out_spec, b_out_spec,
                    pl.BlockSpec(memory_space=pl.ANY)]          # W_hid stays in HBM
        scratch_shapes = [
            pltpu.VMEM((tile_b, n_pad), jnp.float32),            # hidden activation
            pltpu.VMEM((2, n_pad, n_pad), w_dtype),              # 2-slot weight buffer
            pltpu.SemaphoreType.DMA((2,)),
        ]
        whid_traffic = num_tiles * whid_bytes                    # re-fetched per batch tile
    else:
        kernel = functools.partial(_mlp_kernel_resident, **common_kwargs)
        args = [x_p, w_in_p, b_in_p]
        in_specs = [x_spec, w_in_spec, b_in_spec]
        if n_hidden_minus_1 > 0:
            args += [w_hid_p, b_hid_p]
            in_specs += [pl.BlockSpec((n_hidden_minus_1, n_pad, n_pad),
                                      lambda i: (0, 0, 0)),
                         b_hid_spec]
        args += [w_out_p, b_out_p]
        in_specs += [w_out_spec, b_out_spec]
        scratch_shapes = []
        whid_traffic = whid_bytes

    n_layers = n_hidden_minus_1 + 1
    flops = 2 * b_pad * (input_dim * n_pad
                         + n_hidden_minus_1 * n_pad * n_pad
                         + n_pad * o_pad)
    transcendentals = b_pad * n_pad * n_layers + (b_pad * o_pad if sftmax_in_kernel else 0)
    bytes_accessed = (int(x_p.size) * f32 + whid_traffic
                      + (int(w_in_p.size) + int(b_in_p.size) + int(b_out_p.size)) * f32
                      + int(w_out_p.size) * itemsize
                      + (int(b_hid_p.size) * f32 if n_hidden_minus_1 > 0 else 0)
                      + b_pad * o_pad * f32)

    out_padded = pl.pallas_call(
        kernel,
        out_shape=jax.ShapeDtypeStruct((b_pad, o_pad), jnp.float32),
        grid=(num_tiles,),
        in_specs=in_specs,
        out_specs=out_specs,
        scratch_shapes=scratch_shapes,
        compiler_params=pltpu.CompilerParams(
            dimension_semantics=("parallel",),   # batch tiles split across TCs (v7x)
            vmem_limit_bytes=_vmem_limit(resid),
        ),
        cost_estimate=pl.CostEstimate(
            flops=flops,
            transcendentals=transcendentals,
            bytes_accessed=int(bytes_accessed),
        ),
    )(*args)

    # TODO(synk): the slice below is a wrapper-side HBM pass; callers that can consume
    # the padded (b_pad, o_pad) logits directly should skip it.
    out = out_padded[:batch, :out_dim]
    if add_sftmax_layer and not sftmax_in_kernel:
        # TODO(synk): Softmax(0) couples all batch tiles; for multi-tile batches it is
        # applied here on the logits instead of with a second in-kernel reduction pass.
        out = jax.nn.softmax(out, axis=0)
    return out


# --------------------------------------------------------------------------------------
# Parameter init (Xavier-uniform, gain per torch.nn.init.calculate_gain) & JAX reference
# --------------------------------------------------------------------------------------
def init_params(key, input_dim, output_dim, n_hidden_layers, neurons,
                activation_name="tanh"):
    if activation_name == "tanh":
        gain = 5.0 / 3.0
    elif activation_name == "relu":
        gain = math.sqrt(2.0)
    else:
        gain = 1.0

    def xavier(k, fan_in, fan_out, shape):
        limit = gain * math.sqrt(6.0 / (fan_in + fan_out))
        return jax.random.uniform(k, shape, jnp.float32, -limit, limit)

    if n_hidden_layers == 0:
        return {
            "w_lin": xavier(key, input_dim, output_dim, (input_dim, output_dim)),
            "b_lin": jnp.zeros((1, output_dim), jnp.float32),
        }

    keys = jax.random.split(key, n_hidden_layers + 1)
    params = {
        "w_in": xavier(keys[0], input_dim, neurons, (input_dim, neurons)),
        "b_in": jnp.zeros((1, neurons), jnp.float32),
        "w_out": xavier(keys[-1], neurons, output_dim, (neurons, output_dim)),
        "b_out": jnp.zeros((1, output_dim), jnp.float32),
    }
    n_hidden_minus_1 = n_hidden_layers - 1
    if n_hidden_minus_1 > 0:
        w_hid = jnp.stack([
            xavier(keys[1 + k], neurons, neurons, (neurons, neurons))
            for k in range(n_hidden_minus_1)
        ])
    else:
        w_hid = jnp.zeros((0, neurons, neurons), jnp.float32)
    params["w_hid"] = w_hid
    # Biases stored [L-1, 1, N] so the kernel gets a clean (1, N) row per layer.
    params["b_hid"] = jnp.zeros((n_hidden_minus_1, 1, neurons), jnp.float32)
    return params


def _ref_first_layer_matmul(x, w):
    # Mathematically x @ w; evaluated exactly in f32 (as the kernel's VPU input layer is)
    # when the contraction dim is tiny, so the correctness check is precision-consistent.
    if x.shape[1] <= _VPU_INPUT_MAX_DIM:
        return jnp.sum(x[:, :, None] * w[None, :, :], axis=1)
    return x @ w


def reference_forward(x, params, *, add_sftmax_layer=False):
    """Plain-JAX reference (same math as the PyTorch module) for correctness checking."""
    x = jnp.asarray(x, jnp.float32)
    if "w_lin" in params:
        return _ref_first_layer_matmul(x, params["w_lin"]) + params["b_lin"]
    h = jnp.tanh(_ref_first_layer_matmul(x, params["w_in"]) + params["b_in"])
    for k in range(params["w_hid"].shape[0]):
        h = jnp.tanh(h @ params["w_hid"][k] + params["b_hid"][k])
    out = h @ params["w_out"] + params["b_out"]
    if add_sftmax_layer:
        out = jax.nn.softmax(out, axis=0)
    return out


# --------------------------------------------------------------------------------------
if __name__ == "__main__":
    key = jax.random.PRNGKey(0)
    (k_x, k_p, k_b1, k_b2, k_b3, k_x2, k_lin,
     k_deep, k_xd, k_str, k_xs, k_bs) = jax.random.split(key, 12)

    # Shapes consistent with the module's typical use: 2-D inputs -> 20 buckets.
    batch, input_dim, output_dim = 8, 2, 20
    n_hidden_layers, neurons = 3, 32

    x = jax.random.normal(k_x, (batch, input_dim), jnp.float32)
    params = init_params(k_p, input_dim, output_dim, n_hidden_layers, neurons)
    # The module zero-fills biases at init; randomize them so the bias path is exercised.
    params["b_in"] = 0.1 * jax.random.normal(k_b1, params["b_in"].shape, jnp.float32)
    params["b_hid"] = 0.1 * jax.random.normal(k_b2, params["b_hid"].shape, jnp.float32)
    params["b_out"] = 0.1 * jax.random.normal(k_b3, params["b_out"].shape, jnp.float32)

    # --- 1) MLP path, no softmax (module default; resident weights, static unroll) ---
    y = jax.block_until_ready(neural_net_forward(x, params))
    y_ref = reference_forward(x, params)
    assert y.shape == (batch, output_dim)
    assert jnp.allclose(y, y_ref, atol=1e-5, rtol=1e-4), "MLP mismatch vs reference"

    # --- 2) MLP + Softmax(0), batch needing sublane padding (5 -> 8, masked in-kernel) ---
    batch_s = 5
    x_s = jax.random.normal(k_x2, (batch_s, input_dim), jnp.float32)
    y_s = jax.block_until_ready(neural_net_forward(x_s, params, add_sftmax_layer=True))
    y_s_ref = reference_forward(x_s, params, add_sftmax_layer=True)
    assert y_s.shape == (batch_s, output_dim)
    assert jnp.allclose(y_s, y_s_ref, atol=1e-4, rtol=1e-3), "softmax mismatch vs reference"

    # --- 3) n_hidden_layers == 0: "simple linear regression" path ---
    lin_params = init_params(k_lin, input_dim, output_dim, 0, neurons)
    lin_params["b_lin"] = 0.1 * jax.random.normal(k_b1, (1, output_dim), jnp.float32)
    y_lin = jax.block_until_ready(neural_net_forward(x, lin_params))
    y_lin_ref = reference_forward(x, lin_params)
    assert y_lin.shape == (batch, output_dim)
    assert jnp.allclose(y_lin, y_lin_ref, atol=1e-5, rtol=1e-4), "linreg mismatch"

    # --- 4) Deep but small net: resident weights + lax.fori_loop hidden loop ---
    deep_params = init_params(k_deep, input_dim, output_dim, 7, 32)
    deep_params["b_hid"] = 0.1 * jax.random.normal(k_b2, deep_params["b_hid"].shape,
                                                   jnp.float32)
    x_d = jax.random.normal(k_xd, (batch, input_dim), jnp.float32)
    y_d = jax.block_until_ready(neural_net_forward(x_d, deep_params))
    y_d_ref = reference_forward(x_d, deep_params)
    assert jnp.allclose(y_d, y_d_ref, atol=1e-3, rtol=1e-2), "deep resident mismatch"

    # --- 5) Wider/deeper net: hidden-weight stack streamed from HBM via manual DMA ---
    str_params = init_params(k_str, input_dim, output_dim, 10, 256)
    str_params["b_hid"] = 0.1 * jax.random.normal(k_bs, str_params["b_hid"].shape,
                                                  jnp.float32)
    x_str = jax.random.normal(k_xs, (16, input_dim), jnp.float32)
    y_str = jax.block_until_ready(neural_net_forward(x_str, str_params))
    y_str_ref = reference_forward(x_str, str_params)
    assert y_str.shape == (16, output_dim)
    assert jnp.allclose(y_str, y_str_ref, atol=1e-3, rtol=1e-2), "streamed mismatch"

    # --- 6) Optional bf16 weights (f32 accumulation); loose tolerance vs f32 reference ---
    y_bf = jax.block_until_ready(
        neural_net_forward(x, params, weights_dtype=jnp.bfloat16))
    assert jnp.allclose(y_bf, y_ref, atol=5e-2, rtol=5e-2), "bf16 mismatch vs f32 reference"

    print("KERNEL_OK")
</pallas_src>

<mosaic_0001>
module attributes {stable_mosaic.version = 11 : i64} {
  func.func @_mlp_kernel_resident(%arg0: i32, %arg1: memref<8x2xf32, #tpu.memory_space<vmem>>, %arg2: memref<2x128xf32, #tpu.memory_space<vmem>>, %arg3: memref<1x128xf32, #tpu.memory_space<vmem>>, %arg4: memref<2x128x128xf32, #tpu.memory_space<vmem>>, %arg5: memref<2x1x128xf32, #tpu.memory_space<vmem>>, %arg6: memref<128x128xf32, #tpu.memory_space<vmem>>, %arg7: memref<1x128xf32, #tpu.memory_space<vmem>>, %arg8: memref<8x128xf32, #tpu.memory_space<vmem>>) attributes {dimension_semantics = [#tpu.dimension_semantics<parallel>], iteration_bounds = array<i64: 1>, scalar_prefetch = 0 : i64, scratch_operands = 0 : i64, tpu.core_type = #tpu.core_type<tc>, window_params = [{transform_indices = @transform_0, window_bounds = array<i64: 8, 2>}, {pipeline_mode = #tpu.pipeline_mode<synchronous>, transform_indices = @transform_1, window_bounds = array<i64: 2, 128>}, {pipeline_mode = #tpu.pipeline_mode<synchronous>, transform_indices = @transform_2, window_bounds = array<i64: 1, 128>}, {pipeline_mode = #tpu.pipeline_mode<synchronous>, transform_indices = @transform_3, window_bounds = array<i64: 2, 128, 128>}, {pipeline_mode = #tpu.pipeline_mode<synchronous>, transform_indices = @transform_4, window_bounds = array<i64: 2, 1, 128>}, {pipeline_mode = #tpu.pipeline_mode<synchronous>, transform_indices = @transform_5, window_bounds = array<i64: 128, 128>}, {pipeline_mode = #tpu.pipeline_mode<synchronous>, transform_indices = @transform_6, window_bounds = array<i64: 1, 128>}, {transform_indices = @transform_7, window_bounds = array<i64: 8, 128>}]} {
    %c0 = arith.constant 0 : index
    %c0_0 = arith.constant 0 : index
    %0 = vector.load %arg1[%c0, %c0_0] : memref<8x2xf32, #tpu.memory_space<vmem>>, vector<8x2xf32>
    %1 = vector.extract_strided_slice %0 {offsets = [0, 0], sizes = [8, 1], strides = [1, 1]} : vector<8x2xf32> to vector<8x1xf32>
    %c0_1 = arith.constant 0 : index
    %c0_2 = arith.constant 0 : index
    %2 = vector.load %arg2[%c0_1, %c0_2] : memref<2x128xf32, #tpu.memory_space<vmem>>, vector<1x128xf32>
    %3 = vector.broadcast %1 : vector<8x1xf32> to vector<8x128xf32>
    %4 = vector.broadcast %2 : vector<1x128xf32> to vector<8x128xf32>
    %5 = arith.mulf %3, %4 : vector<8x128xf32>
    %6 = vector.extract_strided_slice %0 {offsets = [0, 1], sizes = [8, 1], strides = [1, 1]} : vector<8x2xf32> to vector<8x1xf32>
    %c1 = arith.constant 1 : index
    %c0_3 = arith.constant 0 : index
    %7 = vector.load %arg2[%c1, %c0_3] : memref<2x128xf32, #tpu.memory_space<vmem>>, vector<1x128xf32>
    %8 = vector.broadcast %6 : vector<8x1xf32> to vector<8x128xf32>
    %9 = vector.broadcast %7 : vector<1x128xf32> to vector<8x128xf32>
    %10 = arith.mulf %8, %9 : vector<8x128xf32>
    %11 = arith.addf %5, %10 : vector<8x128xf32>
    %c0_4 = arith.constant 0 : index
    %c0_5 = arith.constant 0 : index
    %12 = vector.load %arg3[%c0_4, %c0_5] : memref<1x128xf32, #tpu.memory_space<vmem>>, vector<1x128xf32>
    %13 = vector.broadcast %12 : vector<1x128xf32> to vector<8x128xf32>
    %14 = arith.addf %11, %13 : vector<8x128xf32>
    %15 = math.tanh %14 : vector<8x128xf32>
    %c0_6 = arith.constant 0 : index
    %c0_7 = arith.constant 0 : index
    %c0_8 = arith.constant 0 : index
    %16 = vector.load %arg4[%c0_6, %c0_7, %c0_8] : memref<2x128x128xf32, #tpu.memory_space<vmem>>, vector<1x128x128xf32>
    %17 = vector.shape_cast %16 : vector<1x128x128xf32> to vector<128x128xf32>
    %cst = arith.constant dense<0.000000e+00> : vector<8x128xf32>
    %18 = tpu.matmul %15, %17, %cst {dimension_numbers = #tpu.dot_dimension_numbers<[1], [0], [0], [1], [0, 0, 1, 1], [], []>} : vector<8x128xf32>, vector<128x128xf32>, vector<8x128xf32> -> vector<8x128xf32>
    %c0_9 = arith.constant 0 : index
    %c0_10 = arith.constant 0 : index
    %c0_11 = arith.constant 0 : index
    %19 = vector.load %arg5[%c0_9, %c0_10, %c0_11] : memref<2x1x128xf32, #tpu.memory_space<vmem>>, vector<1x1x128xf32>
    %20 = vector.shape_cast %19 : vector<1x1x128xf32> to vector<1x128xf32>
    %21 = vector.broadcast %20 : vector<1x128xf32> to vector<8x128xf32>
    %22 = arith.addf %18, %21 : vector<8x128xf32>
    %23 = math.tanh %22 : vector<8x128xf32>
    %c1_12 = arith.constant 1 : index
    %c0_13 = arith.constant 0 : index
    %c0_14 = arith.constant 0 : index
    %24 = vector.load %arg4[%c1_12, %c0_13, %c0_14] : memref<2x128x128xf32, #tpu.memory_space<vmem>>, vector<1x128x128xf32>
    %25 = vector.shape_cast %24 : vector<1x128x128xf32> to vector<128x128xf32>
    %cst_15 = arith.constant dense<0.000000e+00> : vector<8x128xf32>
    %26 = tpu.matmul %23, %25, %cst_15 {dimension_numbers = #tpu.dot_dimension_numbers<[1], [0], [0], [1], [0, 0, 1, 1], [], []>} : vector<8x128xf32>, vector<128x128xf32>, vector<8x128xf32> -> vector<8x128xf32>
    %c1_16 = arith.constant 1 : index
    %c0_17 = arith.constant 0 : index
    %c0_18 = arith.constant 0 : index
    %27 = vector.load %arg5[%c1_16, %c0_17, %c0_18] : memref<2x1x128xf32, #tpu.memory_space<vmem>>, vector<1x1x128xf32>
    %28 = vector.shape_cast %27 : vector<1x1x128xf32> to vector<1x128xf32>
    %29 = vector.broadcast %28 : vector<1x128xf32> to vector<8x128xf32>
    %30 = arith.addf %26, %29 : vector<8x128xf32>
    %31 = math.tanh %30 : vector<8x128xf32>
    %c0_19 = arith.constant 0 : index
    %c0_20 = arith.constant 0 : index
    %32 = vector.load %arg6[%c0_19, %c0_20] : memref<128x128xf32, #tpu.memory_space<vmem>>, vector<128x128xf32>
    %cst_21 = arith.constant dense<0.000000e+00> : vector<8x128xf32>
    %33 = tpu.matmul %31, %32, %cst_21 {dimension_numbers = #tpu.dot_dimension_numbers<[1], [0], [0], [1], [0, 0, 1, 1], [], []>} : vector<8x128xf32>, vector<128x128xf32>, vector<8x128xf32> -> vector<8x128xf32>
    %c0_22 = arith.constant 0 : index
    %c0_23 = arith.constant 0 : index
    %34 = vector.load %arg7[%c0_22, %c0_23] : memref<1x128xf32, #tpu.memory_space<vmem>>, vector<1x128xf32>
    %35 = vector.broadcast %34 : vector<1x128xf32> to vector<8x128xf32>
    %36 = arith.addf %33, %35 : vector<8x128xf32>
    %c0_24 = arith.constant 0 : index
    %c0_25 = arith.constant 0 : index
    %37 = vector.load %arg8[%c0_24, %c0_25] : memref<8x128xf32, #tpu.memory_space<vmem>>, vector<8x128xf32>
    tpu.vector_store %arg8[%c0_24, %c0_25], %36 {strides = array<i32>} : memref<8x128xf32, #tpu.memory_space<vmem>>, vector<8x128xf32>,
    return
  }
  func.func @transform_0(%arg0: i32) -> (i32, i32) {
    %c0_i32 = arith.constant 0 : i32
    %c0_i32_0 = arith.constant 0 : i32
    return %arg0, %c0_i32 : i32, i32
  }
  func.func @transform_1(%arg0: i32) -> (i32, i32) {
    %c0_i32 = arith.constant 0 : i32
    %c0_i32_0 = arith.constant 0 : i32
    %c0_i32_1 = arith.constant 0 : i32
    return %c0_i32, %c0_i32_0 : i32, i32
  }
  func.func @transform_2(%arg0: i32) -> (i32, i32) {
    %c0_i32 = arith.constant 0 : i32
    %c0_i32_0 = arith.constant 0 : i32
    %c0_i32_1 = arith.constant 0 : i32
    return %c0_i32, %c0_i32_0 : i32, i32
  }
  func.func @transform_3(%arg0: i32) -> (i32, i32, i32) {
    %c0_i32 = arith.constant 0 : i32
    %c0_i32_0 = arith.constant 0 : i32
    %c0_i32_1 = arith.constant 0 : i32
    %c0_i32_2 = arith.constant 0 : i32
    return %c0_i32, %c0_i32_0, %c0_i32_1 : i32, i32, i32
  }
  func.func @transform_4(%arg0: i32) -> (i32, i32, i32) {
    %c0_i32 = arith.constant 0 : i32
    %c0_i32_0 = arith.constant 0 : i32
    %c0_i32_1 = arith.constant 0 : i32
    %c0_i32_2 = arith.constant 0 : i32
    return %c0_i32, %c0_i32_0, %c0_i32_1 : i32, i32, i32
  }
  func.func @transform_5(%arg0: i32) -> (i32, i32) {
    %c0_i32 = arith.constant 0 : i32
    %c0_i32_0 = arith.constant 0 : i32
    %c0_i32_1 = arith.constant 0 : i32
    return %c0_i32, %c0_i32_0 : i32, i32
  }
  func.func @transform_6(%arg0: i32) -> (i32, i32) {
    %c0_i32 = arith.constant 0 : i32
    %c0_i32_0 = arith.constant 0 : i32
    %c0_i32_1 = arith.constant 0 : i32
    return %c0_i32, %c0_i32_0 : i32, i32
  }
  func.func @transform_7(%arg0: i32) -> (i32, i32) {
    %c0_i32 = arith.constant 0 : i32
    %c0_i32_0 = arith.constant 0 : i32
    return %arg0, %c0_i32 : i32, i32
  }
}

</mosaic_0001>

<llo_original>
// kernel: tpu_custom_call.1
$region0: #{tpu_custom_call.1}
  #allocation0 [shape = 'u32[]', space=smem, size = 0x4, offset = 0x4, fixed_abs, tag = 'smem constant byte address 0x4 - core index']
  #allocation1 [shape = 'u32[144,128]{1,0:T(1,128)}', space=vmem, size = 0x12000, scoped, tag = 'internal scratch']
  %s0 = inlined_call_operand.vmem [shape: f32[8,2], index: 0, kind: input, shape index: {}]
  %s1 = inlined_call_operand.vmem [shape: f32[2,128], index: 1, kind: input, shape index: {}]
  %s2 = inlined_call_operand.vmem [shape: f32[1,128], index: 2, kind: input, shape index: {}]
  %s3 = inlined_call_operand.hbm [shape: f32[2,128,128], index: 3, kind: input, shape index: {}]
  %s4 = inlined_call_operand.vmem [shape: f32[2,1,128], index: 4, kind: input, shape index: {}]
  %s5 = inlined_call_operand.hbm [shape: f32[128,128], index: 5, kind: input, shape index: {}]
  %s6 = inlined_call_operand.vmem [shape: f32[1,128], index: 6, kind: input, shape index: {}]
  %s7 = inlined_call_operand.hbm [shape: f32[8,128], index: 7, kind: output, shape index: {}]
  %s8 = sld [smem:[#allocation0]]
  $region46: #{tpu_custom_call.1} parent=0
    _
  %s10 = ssub.s32 1, %s8
  %s11 = scalar_select 0, %s10, %s8
  $region1: #{tpu_custom_call.1} parent=0
    #allocation2 [shape = 'u8[131072]{0}', space=vmem, size = 0x20000, scoped, tag = 'input window, operand 3, single buffered']
    #allocation3 [shape = 's32[1]{0}', space=sflag, size = 0x4, scoped, tag = 'scoped memory for tpu_custom_call.1']
    #allocation4 [shape = 's32[1]{0}', space=sflag, size = 0x4, scoped, tag = 'scoped memory for tpu_custom_call.1']
    #allocation5 [shape = 'u8[65536]{0}', space=vmem, size = 0x10000, scoped, tag = 'input window, operand 5, single buffered']
    #allocation6 [shape = 's32[1]{0}', space=sflag, size = 0x4, scoped, tag = 'scoped memory for tpu_custom_call.1']
    #allocation7 [shape = 'u8[4096]{0}', space=vmem, size = 0x1000, scoped, tag = 'output window, operand 0, single buffered']
    %12 = vsyncpa [#allocation3], 0
    %13 = vsyncpa [#allocation6], 0
    %14 = vsyncpa [#allocation4], 0
    // Predicated region
    $region2: #{tpu_custom_call.1} parent=1 // pred_check
      _
    $region3: #{tpu_custom_call.1} parent=1 // pred_check_branch
      %16 = sbr.rel (0) target = $region5
    $region4: #{tpu_custom_call.1} parent=1 // pred_region
      _
    $region5: #{tpu_custom_call.1} parent=1 // pred_fallthru
      _
    // Predicated region
    $region6: #{tpu_custom_call.1} parent=1 // pred_check
      _
    $region7: #{tpu_custom_call.1} parent=1 // pred_check_branch
      %18 = sbr.rel (0) target = $region9
    $region8: #{tpu_custom_call.1} parent=1 // pred_region
      _
    $region9: #{tpu_custom_call.1} parent=1 // pred_fallthru
      _
    // Predicated region
    $region10: #{tpu_custom_call.1} parent=1 // pred_check
      _
    $region11: #{tpu_custom_call.1} parent=1 // pred_check_branch
      %20 = sbr.rel (0) target = $region13
    $region12: #{tpu_custom_call.1} parent=1 // pred_region
      _
    $region13: #{tpu_custom_call.1} parent=1 // pred_fallthru
      _
    // Predicated region
    $region14: #{tpu_custom_call.1} parent=1 // pred_check
      _
    $region15: #{tpu_custom_call.1} parent=1 // pred_check_branch
      %22 = sbr.rel (0) target = $region17
    $region16: #{tpu_custom_call.1} parent=1 // pred_region
      %s24 = ssub.s32 4096, 4096
      %25 = vsyncadd [#allocation3], %s24
      %s26 = sshll.u32 [#allocation2], 4
      %s27 = int_to_ptr.vmem [resolvable:$true] %s26
      %32 = dma.hbm_to_vmem [thread:$0]  %s3, 4096, %s27, [#allocation3], 128, 128, 8
    $region17: #{tpu_custom_call.1} parent=1 // pred_fallthru
      _
    // Predicated region
    $region18: #{tpu_custom_call.1} parent=1 // pred_check
      _
    $region19: #{tpu_custom_call.1} parent=1 // pred_check_branch
      %34 = sbr.rel (0) target = $region21
    $region20: #{tpu_custom_call.1} parent=1 // pred_region
      _
    $region21: #{tpu_custom_call.1} parent=1 // pred_fallthru
      _
    // Predicated region
    $region22: #{tpu_custom_call.1} parent=1 // pred_check
      _
    $region23: #{tpu_custom_call.1} parent=1 // pred_check_branch
      %36 = sbr.rel (0) target = $region25
    $region24: #{tpu_custom_call.1} parent=1 // pred_region
      %s38 = ssub.s32 2048, 2048
      %39 = vsyncadd [#allocation6], %s38
      %s40 = sshll.u32 [#allocation5], 4
      %s41 = int_to_ptr.vmem [resolvable:$true] %s40
      %46 = dma.hbm_to_vmem [thread:$0]  %s5, 2048, %s41, [#allocation6], 128, 128, 8
    $region25: #{tpu_custom_call.1} parent=1 // pred_fallthru
      _
    // Predicated region
    $region26: #{tpu_custom_call.1} parent=1 // pred_check
      _
    $region27: #{tpu_custom_call.1} parent=1 // pred_check_branch
      %48 = sbr.rel (0) target = $region29
    $region28: #{tpu_custom_call.1} parent=1 // pred_region
      _
    $region29: #{tpu_custom_call.1} parent=1 // pred_fallthru
      _
    // Predicated region
    $region30: #{tpu_custom_call.1} parent=1 // pred_check
      _
    $region31: #{tpu_custom_call.1} parent=1 // pred_check_branch
      %50 = sbr.rel (0) target = $region33
    $region32: #{tpu_custom_call.1} parent=1 // pred_region
      %51 = dma.done [#allocation3], 4096
    $region33: #{tpu_custom_call.1} parent=1 // pred_fallthru
      _
    // Predicated region
    $region34: #{tpu_custom_call.1} parent=1 // pred_check
      _
    $region35: #{tpu_custom_call.1} parent=1 // pred_check_branch
      %53 = sbr.rel (0) target = $region37
    $region36: #{tpu_custom_call.1} parent=1 // pred_region
      %54 = dma.done [#allocation6], 2048
    $region37: #{tpu_custom_call.1} parent=1 // pred_fallthru
      _
    %v55 = vld [vmem:[%s0] sm:$0xff]
    %v56 = vld [vmem:[%s1] sm:$0x1]
    %58 = vset.pattern.permute.xlu0 0
    %59 = vperm.xlu0 %58, %v55
    %v60 = vpop.permute.xlu0 %59
    %v62 = vlaneseq
    %v63 = vshrl.u32 %v62, 7
    %v64 = vsub.s32 0, %v63
    %v65 = vrot.slane %v56, %v64
    %v66 = vmul.f32 %v60, %v65
    %v67 = vld [vmem:[%s1 + $0x1] sm:$0x1]
    %68 = vset.pattern.permute.xlu0 1
    %69 = vperm.xlu0 %68, %v55
    %v70 = vpop.permute.xlu0 %69
    %v72 = vlaneseq
    %v73 = vshrl.u32 %v72, 7
    %v74 = vsub.s32 0, %v73
    %v75 = vrot.slane %v67, %v74
    %v76 = vmul.f32 %v70, %v75
    %v77 = vadd.f32 %v66, %v76
    %v78 = vld [vmem:[%s2] sm:$0x1]
    %v80 = vlaneseq
    %v81 = vshrl.u32 %v80, 7
    %v82 = vsub.s32 0, %v81
    %v83 = vrot.slane %v78, %v82
    %v85 = vadd.f32 %v77, %v83
    %v86 = vtanh.pop %v85
    %v87 = vld [vmem:[#allocation2] sm:$0xff]
    %v88 = vld [vmem:[#allocation2 + $0x8] sm:$0xff]
    %v89 = vld [vmem:[#allocation2 + $0x10] sm:$0xff]
    %v90 = vld [vmem:[#allocation2 + $0x18] sm:$0xff]
    %v91 = vld [vmem:[#allocation2 + $0x20] sm:$0xff]
    %v92 = vld [vmem:[#allocation2 + $0x28] sm:$0xff]
    %v93 = vld [vmem:[#allocation2 + $0x30] sm:$0xff]
    %v94 = vld [vmem:[#allocation2 + $0x38] sm:$0xff]
    %v95 = vld [vmem:[#allocation2 + $0x40] sm:$0xff]
    %v96 = vld [vmem:[#allocation2 + $0x48] sm:$0xff]
    %v97 = vld [vmem:[#allocation2 + $0x50] sm:$0xff]
    %v98 = vld [vmem:[#allocation2 + $0x58] sm:$0xff]
    %v99 = vld [vmem:[#allocation2 + $0x60] sm:$0xff]
    %v100 = vld [vmem:[#allocation2 + $0x68] sm:$0xff]
    %v101 = vld [vmem:[#allocation2 + $0x70] sm:$0xff]
    %v102 = vld [vmem:[#allocation2 + $0x78] sm:$0xff]
    %v103 = vld [vmem:[%s4] sm:$0x1]
    %v105 = vlaneseq
    %v106 = vshrl.u32 %v105, 7
    %v107 = vsub.s32 0, %v106
    %v108 = vrot.slane %v103, %v107
    %110 = vmatprep.subr.mxu0 0.0
    %111 = vmatpush1.msra.mxu0 %v87
    %112 = vmatprep.subr.mxu0 0.0
    %113 = vmatpush1.msra.mxu0 %v88
    %114 = vmatprep.subr.mxu0 0.0
    %115 = vmatpush1.msra.mxu0 %v89
    %116 = vmatprep.subr.mxu0 0.0
    %117 = vmatpush1.msra.mxu0 %v90
    %118 = vmatprep.subr.mxu0 0.0
    %119 = vmatpush1.msra.mxu0 %v91
    %120 = vmatprep.subr.mxu0 0.0
    %121 = vmatpush1.msra.mxu0 %v92
    %122 = vmatprep.subr.mxu0 0.0
    %123 = vmatpush1.msra.mxu0 %v93
    %124 = vmatprep.subr.mxu0 0.0
    %125 = vmatpush1.msra.mxu0 %v94
    %126 = vmatprep.subr.mxu0 0.0
    %127 = vmatpush1.msra.mxu0 %v95
    %128 = vmatprep.subr.mxu0 0.0
    %129 = vmatpush1.msra.mxu0 %v96
    %130 = vmatprep.subr.mxu0 0.0
    %131 = vmatpush1.msra.mxu0 %v97
    %132 = vmatprep.subr.mxu0 0.0
    %133 = vmatpush1.msra.mxu0 %v98
    %134 = vmatprep.subr.mxu0 0.0
    %135 = vmatpush1.msra.mxu0 %v99
    %136 = vmatprep.subr.mxu0 0.0
    %137 = vmatpush1.msra.mxu0 %v100
    %138 = vmatprep.subr.mxu0 0.0
    %139 = vmatpush1.msra.mxu0 %v101
    %140 = vmatprep.subr.mxu0 0.0
    %141 = vmatpush1.msra.mxu0 %v102
    %142 = vmatprep.subr.mxu0 0.0
    %143 = vmatpush1.msra.mxu0 0.0
    %144 = vmatprep.subr.mxu0 0.0
    %145 = vmatpush1.msra.mxu0 0.0
    %146 = vmatprep.subr.mxu0 0.0
    %147 = vmatpush1.msra.mxu0 0.0
    %148 = vmatprep.subr.mxu0 0.0
    %149 = vmatpush1.msra.mxu0 0.0
    %150 = vmatprep.subr.mxu0 0.0
    %151 = vmatpush1.msra.mxu0 0.0
    %152 = vmatprep.subr.mxu0 0.0
    %153 = vmatpush1.msra.mxu0 0.0
    %154 = vmatprep.subr.mxu0 0.0
    %155 = vmatpush1.msra.mxu0 0.0
    %156 = vmatprep.subr.mxu0 0.0
    %157 = vmatpush1.msra.mxu0 0.0
    %158 = vmatprep.subr.mxu0 0.0
    %159 = vmatpush1.msra.mxu0 0.0
    %160 = vmatprep.subr.mxu0 0.0
    %161 = vmatpush1.msra.mxu0 0.0
    %162 = vmatprep.subr.mxu0 0.0
    %163 = vmatpush1.msra.mxu0 0.0
    %164 = vmatprep.subr.mxu0 0.0
    %165 = vmatpush1.msra.mxu0 0.0
    %166 = vmatprep.subr.mxu0 0.0
    %167 = vmatpush1.msra.mxu0 0.0
    %168 = vmatprep.subr.mxu0 0.0
    %169 = vmatpush1.msra.mxu0 0.0
    %170 = vmatprep.subr.mxu0 0.0
    %171 = vmatpush1.msra.mxu0 0.0
    %172 = vmatprep.subr.mxu0 0.0
    %173 = vmatpush1.msra.mxu0 0.0
    %174 = vmatprep.mubr.f32.mxu0 0.0
    %175 = vmatmul.mubr.f32.gmra.mrb[0].mxu0 %v86
    %v176 = vpop.f32.mrb[0].mxu0
    %v177 = vadd.f32 %v108, %v176
    %v178 = vpop.f32.mrb[0].mxu0
    %179 = vdwg.mxu0
    %v180 = vtanh.pop %v177
    %s181 = scalar_lea.vmem [#allocation2], 128
    %v182 = vld [vmem:[%s181] sm:$0xff]
    %v183 = vld [vmem:[%s181 + $0x8] sm:$0xff]
    %v184 = vld [vmem:[%s181 + $0x10] sm:$0xff]
    %v185 = vld [vmem:[%s181 + $0x18] sm:$0xff]
    %v186 = vld [vmem:[%s181 + $0x20] sm:$0xff]
    %v187 = vld [vmem:[%s181 + $0x28] sm:$0xff]
    %v188 = vld [vmem:[%s181 + $0x30] sm:$0xff]
    %v189 = vld [vmem:[%s181 + $0x38] sm:$0xff]
    %v190 = vld [vmem:[%s181 + $0x40] sm:$0xff]
    %v191 = vld [vmem:[%s181 + $0x48] sm:$0xff]
    %v192 = vld [vmem:[%s181 + $0x50] sm:$0xff]
    %v193 = vld [vmem:[%s181 + $0x58] sm:$0xff]
    %v194 = vld [vmem:[%s181 + $0x60] sm:$0xff]
    %v195 = vld [vmem:[%s181 + $0x68] sm:$0xff]
    %v196 = vld [vmem:[%s181 + $0x70] sm:$0xff]
    %v197 = vld [vmem:[%s181 + $0x78] sm:$0xff]
    %s198 = scalar_lea.vmem %s4, 1
    %v199 = vld [vmem:[%s198] sm:$0x1]
    %v201 = vlaneseq
    %v202 = vshrl.u32 %v201, 7
    %v203 = vsub.s32 0, %v202
    %v204 = vrot.slane %v199, %v203
    %206 = vmatprep.subr.mxu0 0.0
    %207 = vmatpush1.msra.mxu0 %v182
    %208 = vmatprep.subr.mxu0 0.0
    %209 = vmatpush1.msra.mxu0 %v183
    %210 = vmatprep.subr.mxu0 0.0
    %211 = vmatpush1.msra.mxu0 %v184
    %212 = vmatprep.subr.mxu0 0.0
    %213 = vmatpush1.msra.mxu0 %v185
    %214 = vmatprep.subr.mxu0 0.0
    %215 = vmatpush1.msra.mxu0 %v186
    %216 = vmatprep.subr.mxu0 0.0
    %217 = vmatpush1.msra.mxu0 %v187
    %218 = vmatprep.subr.mxu0 0.0
    %219 = vmatpush1.msra.mxu0 %v188
    %220 = vmatprep.subr.mxu0 0.0
    %221 = vmatpush1.msra.mxu0 %v189
    %222 = vmatprep.subr.mxu0 0.0
    %223 = vmatpush1.msra.mxu0 %v190
    %224 = vmatprep.subr.mxu0 0.0
    %225 = vmatpush1.msra.mxu0 %v191
    %226 = vmatprep.subr.mxu0 0.0
    %227 = vmatpush1.msra.mxu0 %v192
    %228 = vmatprep.subr.mxu0 0.0
    %229 = vmatpush1.msra.mxu0 %v193
    %230 = vmatprep.subr.mxu0 0.0
    %231 = vmatpush1.msra.mxu0 %v194
    %232 = vmatprep.subr.mxu0 0.0
    %233 = vmatpush1.msra.mxu0 %v195
    %234 = vmatprep.subr.mxu0 0.0
    %235 = vmatpush1.msra.mxu0 %v196
    %236 = vmatprep.subr.mxu0 0.0
    %237 = vmatpush1.msra.mxu0 %v197
    %238 = vmatprep.subr.mxu0 0.0
    %239 = vmatpush1.msra.mxu0 0.0
    %240 = vmatprep.subr.mxu0 0.0
    %241 = vmatpush1.msra.mxu0 0.0
    %242 = vmatprep.subr.mxu0 0.0
    %243 = vmatpush1.msra.mxu0 0.0
    %244 = vmatprep.subr.mxu0 0.0
    %245 = vmatpush1.msra.mxu0 0.0
    %246 = vmatprep.subr.mxu0 0.0
    %247 = vmatpush1.msra.mxu0 0.0
    %248 = vmatprep.subr.mxu0 0.0
    %249 = vmatpush1.msra.mxu0 0.0
    %250 = vmatprep.subr.mxu0 0.0
    %251 = vmatpush1.msra.mxu0 0.0
    %252 = vmatprep.subr.mxu0 0.0
    %253 = vmatpush1.msra.mxu0 0.0
    %254 = vmatprep.subr.mxu0 0.0
    %255 = vmatpush1.msra.mxu0 0.0
    %256 = vmatprep.subr.mxu0 0.0
    %257 = vmatpush1.msra.mxu0 0.0
    %258 = vmatprep.subr.mxu0 0.0
    %259 = vmatpush1.msra.mxu0 0.0
    %260 = vmatprep.subr.mxu0 0.0
    %261 = vmatpush1.msra.mxu0 0.0
    %262 = vmatprep.subr.mxu0 0.0
    %263 = vmatpush1.msra.mxu0 0.0
    %264 = vmatprep.subr.mxu0 0.0
    %265 = vmatpush1.msra.mxu0 0.0
    %266 = vmatprep.subr.mxu0 0.0
    %267 = vmatpush1.msra.mxu0 0.0
    %268 = vmatprep.subr.mxu0 0.0
    %269 = vmatpush1.msra.mxu0 0.0
    %270 = vmatprep.mubr.f32.mxu0 0.0
    %271 = vmatmul.mubr.f32.gmra.mrb[0].mxu0 %v180
    %v272 = vpop.f32.mrb[0].mxu0
    %v273 = vadd.f32 %v204, %v272
    %v274 = vpop.f32.mrb[0].mxu0
    %275 = vdwg.mxu0
    %v276 = vtanh.pop %v273
    %v277 = vld [vmem:[#allocation5] sm:$0xff]
    %v278 = vld [vmem:[#allocation5 + $0x8] sm:$0xff]
    %v279 = vld [vmem:[#allocation5 + $0x10] sm:$0xff]
    %v280 = vld [vmem:[#allocation5 + $0x18] sm:$0xff]
    %v281 = vld [vmem:[#allocation5 + $0x20] sm:$0xff]
    %v282 = vld [vmem:[#allocation5 + $0x28] sm:$0xff]
    %v283 = vld [vmem:[#allocation5 + $0x30] sm:$0xff]
    %v284 = vld [vmem:[#allocation5 + $0x38] sm:$0xff]
    %v285 = vld [vmem:[#allocation5 + $0x40] sm:$0xff]
    %v286 = vld [vmem:[#allocation5 + $0x48] sm:$0xff]
    %v287 = vld [vmem:[#allocation5 + $0x50] sm:$0xff]
    %v288 = vld [vmem:[#allocation5 + $0x58] sm:$0xff]
    %v289 = vld [vmem:[#allocation5 + $0x60] sm:$0xff]
    %v290 = vld [vmem:[#allocation5 + $0x68] sm:$0xff]
    %v291 = vld [vmem:[#allocation5 + $0x70] sm:$0xff]
    %v292 = vld [vmem:[#allocation5 + $0x78] sm:$0xff]
    %v293 = vld [vmem:[%s6] sm:$0x1]
    %v295 = vlaneseq
    %v296 = vshrl.u32 %v295, 7
    %v297 = vsub.s32 0, %v296
    %v298 = vrot.slane %v293, %v297
    %300 = vmatprep.subr.mxu0 0.0
    %301 = vmatpush1.msra.mxu0 %v277
    %302 = vmatprep.subr.mxu0 0.0
    %303 = vmatpush1.msra.mxu0 %v278
    %304 = vmatprep.subr.mxu0 0.0
    %305 = vmatpush1.msra.mxu0 %v279
    %306 = vmatprep.subr.mxu0 0.0
    %307 = vmatpush1.msra.mxu0 %v280
    %308 = vmatprep.subr.mxu0 0.0
    %309 = vmatpush1.msra.mxu0 %v281
    %310 = vmatprep.subr.mxu0 0.0
    %311 = vmatpush1.msra.mxu0 %v282
    %312 = vmatprep.subr.mxu0 0.0
    %313 = vmatpush1.msra.mxu0 %v283
    %314 = vmatprep.subr.mxu0 0.0
    %315 = vmatpush1.msra.mxu0 %v284
    %316 = vmatprep.subr.mxu0 0.0
    %317 = vmatpush1.msra.mxu0 %v285
    %318 = vmatprep.subr.mxu0 0.0
    %319 = vmatpush1.msra.mxu0 %v286
    %320 = vmatprep.subr.mxu0 0.0
    %321 = vmatpush1.msra.mxu0 %v287
    %322 = vmatprep.subr.mxu0 0.0
    %323 = vmatpush1.msra.mxu0 %v288
    %324 = vmatprep.subr.mxu0 0.0
    %325 = vmatpush1.msra.mxu0 %v289
    %326 = vmatprep.subr.mxu0 0.0
    %327 = vmatpush1.msra.mxu0 %v290
    %328 = vmatprep.subr.mxu0 0.0
    %329 = vmatpush1.msra.mxu0 %v291
    %330 = vmatprep.subr.mxu0 0.0
    %331 = vmatpush1.msra.mxu0 %v292
    %332 = vmatprep.subr.mxu0 0.0
    %333 = vmatpush1.msra.mxu0 0.0
    %334 = vmatprep.subr.mxu0 0.0
    %335 = vmatpush1.msra.mxu0 0.0
    %336 = vmatprep.subr.mxu0 0.0
    %337 = vmatpush1.msra.mxu0 0.0
    %338 = vmatprep.subr.mxu0 0.0
    %339 = vmatpush1.msra.mxu0 0.0
    %340 = vmatprep.subr.mxu0 0.0
    %341 = vmatpush1.msra.mxu0 0.0
    %342 = vmatprep.subr.mxu0 0.0
    %343 = vmatpush1.msra.mxu0 0.0
    %344 = vmatprep.subr.mxu0 0.0
    %345 = vmatpush1.msra.mxu0 0.0
    %346 = vmatprep.subr.mxu0 0.0
    %347 = vmatpush1.msra.mxu0 0.0
    %348 = vmatprep.subr.mxu0 0.0
    %349 = vmatpush1.msra.mxu0 0.0
    %350 = vmatprep.subr.mxu0 0.0
    %351 = vmatpush1.msra.mxu0 0.0
    %352 = vmatprep.subr.mxu0 0.0
    %353 = vmatpush1.msra.mxu0 0.0
    %354 = vmatprep.subr.mxu0 0.0
    %355 = vmatpush1.msra.mxu0 0.0
    %356 = vmatprep.subr.mxu0 0.0
    %357 = vmatpush1.msra.mxu0 0.0
    %358 = vmatprep.subr.mxu0 0.0
    %359 = vmatpush1.msra.mxu0 0.0
    %360 = vmatprep.subr.mxu0 0.0
    %361 = vmatpush1.msra.mxu0 0.0
    %362 = vmatprep.subr.mxu0 0.0
    %363 = vmatpush1.msra.mxu0 0.0
    %364 = vmatprep.mubr.f32.mxu0 0.0
    %365 = vmatmul.mubr.f32.gmra.mrb[0].mxu0 %v276
    %v366 = vpop.f32.mrb[0].mxu0
    %v367 = vadd.f32 %v298, %v366
    %v368 = vpop.f32.mrb[0].mxu0
    %369 = vdwg.mxu0
    %370 = vst [vmem:[#allocation7] sm:$0xff] %v367
    // Predicated region
    $region38: #{tpu_custom_call.1} parent=1 // pred_check
      _
    $region39: #{tpu_custom_call.1} parent=1 // pred_check_branch
      %372 = sbr.rel (0) target = $region41
    $region40: #{tpu_custom_call.1} parent=1 // pred_region
      %s374 = ssub.s32 128, 128
      %375 = vsyncadd [#allocation4], %s374
      %s377 = sshll.u32 [#allocation7], 4
      %s378 = int_to_ptr.vmem [resolvable:$true] %s377
      %380 = dma.vmem_to_hbm [thread:$0]  %s378, 128, %s7, [#allocation4]
    $region41: #{tpu_custom_call.1} parent=1 // pred_fallthru
      _
    // Predicated region
    $region42: #{tpu_custom_call.1} parent=1 // pred_check
      _
    $region43: #{tpu_custom_call.1} parent=1 // pred_check_branch
      %382 = sbr.rel (0) target = $region45
    $region44: #{tpu_custom_call.1} parent=1 // pred_region
      %383 = dma.done [#allocation4], 128
    $region45: #{tpu_custom_call.1} parent=1 // pred_fallthru
      _
    %384 = vsyncpa [#allocation3], 1
    %385 = vsyncpa [#allocation6], 1
    %386 = vsyncpa [#allocation4], 1

</llo_original>
